<compile_context>
chip_gen: v7x
topology: tpu7x:2x2x1
jax: 0.10.0
libtpu: 0.0.40
codegen_flags: <defaults>
</compile_context>

<pallas_src>
import functools

import jax
import jax.numpy as jnp
from jax.experimental import pallas as pl
from jax.experimental.pallas import tpu as pltpu


# ----------------------------- small helpers ------------------------------ #

def _round_up(n, m):
    return ((n + m - 1) // m) * m


def _cdiv(a, b):
    return -(-a // b)


def _tpu_info():
    """(vmem_budget_bytes, mxu_is_256) derived from the attached device."""
    try:
        kind = jax.devices()[0].device_kind.lower()
    except Exception:  # pragma: no cover - e.g. interpret mode
        kind = ""
    is_v7 = "v7" in kind
    # v2..v5 use 128x128 MXU tiles; v6e/v7x use 2x256x256.
    small_mxu = any(t in kind for t in ("v2", "v3", "v4", "v5"))
    vmem_budget = (56 << 20) if is_v7 else (100 << 20)   # v7x: 64 MiB physical
    return vmem_budget, (not small_mxu)


def _pad_dim(d, mxu_256):
    """Lane-dense padding; bump to 256 on v6e/v7x if a lone 128 chunk remains."""
    p = _round_up(d, 128)
    if mxu_256 and d > 128 and p % 256 != 0:
        p = _round_up(d, 256)
    return p


def _choose_tiling(B, dip, dop, x_bytes, w_bytes, out_bytes,
                   vmem_budget, row_align, weight_buffers, block_m_cap):
    """Pick (tm, n_tiles, Bp): VMEM-budgeted tile size, even batch split."""
    # Resident weights (w1, wr: dip x dop; w2: dop x dop) + f32 biases.
    weight_bytes = weight_buffers * w_bytes * (2 * dip * dop + dop * dop) \
        + weight_buffers * 4 * 3 * dop
    # Per batch-row: double-buffered x + out tiles plus f32 temps (h, r, slack).
    per_row = 2 * dip * x_bytes + 2 * dop * out_bytes + 4 * 4 * dop
    avail = vmem_budget - weight_bytes - (2 << 20)       # 2 MiB compiler slack
    tm_cap = (avail // per_row) if avail > 0 else row_align
    tm_cap = max(row_align, (tm_cap // row_align) * row_align)
    tm_cap = min(tm_cap, block_m_cap)

    # >= 2 tiles keeps both v7x TensorCores busy and gives the pipeline
    # something to overlap; even split keeps batch-padding waste tiny.
    min_tiles = 2 if B >= 2 * row_align else 1
    n_tiles = max(_cdiv(B, tm_cap), min_tiles)
    tm = _round_up(_cdiv(B, n_tiles), row_align)
    return tm, n_tiles, n_tiles * tm


# --------------------------------- kernel --------------------------------- #

def _silu(h, approx_recip):
    # SiLU(h) = h / (1 + exp(-h)); exp and (approx) reciprocal go to the EUP.
    return h * pl.reciprocal(1.0 + jnp.exp(-h), approx=approx_recip)


def _linear_res_block_kernel(x_ref, w1_ref, b1_ref, w2_ref, b2_ref,
                             wr_ref, br_ref, o_ref, *, approx_recip):
    x = x_ref[...]                                        # already compute dtype

    # Layer 1: Linear -> SiLU (f32 accumulation on the MXU).
    h = jnp.dot(x, w1_ref[...], preferred_element_type=jnp.float32)
    h = _silu(h + b1_ref[...], approx_recip)

    # Layer 2: Linear -> SiLU.
    h = jnp.dot(h.astype(w2_ref.dtype), w2_ref[...],
                preferred_element_type=jnp.float32)
    h = _silu(h + b2_ref[...], approx_recip)

    # Residual branch last: x is still resident in x_ref, and only one
    # (tm, dop) f32 intermediate is live across the matmuls above.
    r = jnp.dot(x, wr_ref[...], preferred_element_type=jnp.float32)

    o_ref[...] = (h + r + br_ref[...]).astype(o_ref.dtype)


# ------------------------------ host wrappers ------------------------------ #

def prepare_params(w1, b1, w2, b2, wr, br, *, compute_dtype=jnp.bfloat16,
                   mxu_256=None):
    """Pad + cast parameters once (hoisted out of the per-call path).

    w*: (fan_in, fan_out) (PyTorch weights transposed), b*: (fan_out,).
    """
    if mxu_256 is None:
        _, mxu_256 = _tpu_info()
    dim_in, dim_out = w1.shape
    dip = _pad_dim(dim_in, mxu_256)
    dop = _pad_dim(dim_out, mxu_256)
    cdt = jnp.dtype(compute_dtype)
    f32 = jnp.float32

    w1p = jnp.zeros((dip, dop), cdt).at[:dim_in, :dim_out].set(w1.astype(cdt))
    wrp = jnp.zeros((dip, dop), cdt).at[:dim_in, :dim_out].set(wr.astype(cdt))
    w2p = jnp.zeros((dop, dop), cdt).at[:dim_out, :dim_out].set(w2.astype(cdt))
    b1p = jnp.zeros((1, dop), f32).at[0, :dim_out].set(b1.astype(f32))
    b2p = jnp.zeros((1, dop), f32).at[0, :dim_out].set(b2.astype(f32))
    brp = jnp.zeros((1, dop), f32).at[0, :dim_out].set(br.astype(f32))

    return dict(w1=w1p, b1=b1p, w2=w2p, b2=b2p, wr=wrp, br=brp,
                dim_in=dim_in, dim_out=dim_out, dip=dip, dop=dop,
                compute_dtype=cdt)


def linear_res_block(x, params, *, out_dtype=None, block_m_cap=1024,
                     single_buffer_weights=True):
    """Apply LinearResBlock.  x: (..., dim_in) -> (..., dim_out)."""
    dim_in = params["dim_in"]
    dim_out = params["dim_out"]
    dip, dop = params["dip"], params["dop"]
    cdt = params["compute_dtype"]
    out_dtype = jnp.dtype(out_dtype) if out_dtype is not None else x.dtype

    lead_shape = x.shape[:-1]
    assert x.shape[-1] == dim_in
    x2 = x.reshape(-1, dim_in)
    B = x2.shape[0]

    vmem_budget, _ = _tpu_info()
    row_align = max(8, 32 // cdt.itemsize)               # 8 for f32, 16 for bf16
    wbuf = 1 if single_buffer_weights else 2
    tm, n_tiles, Bp = _choose_tiling(
        B, dip, dop,
        x_bytes=cdt.itemsize, w_bytes=cdt.itemsize, out_bytes=out_dtype.itemsize,
        vmem_budget=vmem_budget, row_align=row_align,
        weight_buffers=wbuf, block_m_cap=block_m_cap)

    # Pad / cast x only when needed (bf16 x halves HBM traffic + VMEM).
    if (Bp, dip) == (B, dim_in):
        xp = x2 if x2.dtype == cdt else x2.astype(cdt)
    else:
        xp = jnp.zeros((Bp, dip), cdt).at[:B, :dim_in].set(x2.astype(cdt))

    kernel = functools.partial(
        _linear_res_block_kernel,
        approx_recip=(cdt != jnp.dtype(jnp.float32)),
    )

    def _call(weight_pipeline_mode):
        def const_spec(shape):
            return pl.BlockSpec(shape, lambda i: (0, 0),
                                pipeline_mode=weight_pipeline_mode)
        return pl.pallas_call(
            kernel,
            out_shape=jax.ShapeDtypeStruct((Bp, dop), out_dtype),
            grid=(n_tiles,),
            in_specs=[
                # x: tiled over batch, double-buffered by the pipeline.
                pl.BlockSpec((tm, dip), lambda i: (i, 0)),
                # Weights / biases: constant index_map -> VMEM-resident.
                const_spec((dip, dop)), const_spec((1, dop)),   # W1, b1
                const_spec((dop, dop)), const_spec((1, dop)),   # W2, b2
                const_spec((dip, dop)), const_spec((1, dop)),   # Wr, br
            ],
            out_specs=pl.BlockSpec((tm, dop), lambda i: (i, 0)),
            compiler_params=pltpu.CompilerParams(
                dimension_semantics=("parallel",),   # batch across TCs on v7x
                vmem_limit_bytes=vmem_budget,
            ),
        )(xp, params["w1"], params["b1"], params["w2"], params["b2"],
          params["wr"], params["br"])

    if single_buffer_weights:
        try:
            # Constant-index inputs only need a single resident buffer.
            out = _call(pl.Buffered(1))
        except Exception:
            # Fallback: default double-buffered pipeline (always supported).
            out = _call(None)
    else:
        out = _call(None)

    if (Bp, dop) != (B, dim_out):
        out = out[:B, :dim_out]
    return out.reshape(*lead_shape, dim_out)


def _reference(x, w1, b1, w2, b2, wr, br):
    h = jax.nn.silu(x @ w1 + b1)
    h = jax.nn.silu(h @ w2 + b2)
    return h + (x @ wr + br)


# ----------------------------------- demo ---------------------------------- #

if __name__ == "__main__":
    key = jax.random.PRNGKey(0)
    B, dim_in, dim_out = 8, 16, 32

    kx, k1, kb1, k2, kb2, kr, kbr = jax.random.split(key, 7)
    x = jax.random.normal(kx, (B, dim_in), dtype=jnp.float32)

    # Deterministic parameter init (uniform, nn.Linear-style scaling).
    def init_w(k, fan_in, fan_out):
        bound = 1.0 / jnp.sqrt(fan_in)
        return jax.random.uniform(k, (fan_in, fan_out), jnp.float32, -bound, bound)

    def init_b(k, fan_in, fan_out):
        bound = 1.0 / jnp.sqrt(fan_in)
        return jax.random.uniform(k, (fan_out,), jnp.float32, -bound, bound)

    w1 = init_w(k1, dim_in, dim_out)
    b1 = init_b(kb1, dim_in, dim_out)
    w2 = init_w(k2, dim_out, dim_out)
    b2 = init_b(kb2, dim_out, dim_out)
    wr = init_w(kr, dim_in, dim_out)
    br = init_b(kbr, dim_in, dim_out)

    ref = _reference(x, w1, b1, w2, b2, wr, br)

    # Exact path (f32 MXU operands, exact reciprocal) -> tight tolerance.
    p_f32 = prepare_params(w1, b1, w2, b2, wr, br, compute_dtype=jnp.float32)
    out_f32 = jax.block_until_ready(linear_res_block(x, p_f32))
    assert out_f32.shape == (B, dim_out)
    assert jnp.allclose(out_f32, ref, atol=1e-5, rtol=1e-5)

    # Performance path (bf16 MXU operands, f32 accumulation) -> relaxed tol.
    p_bf16 = prepare_params(w1, b1, w2, b2, wr, br, compute_dtype=jnp.bfloat16)
    out_bf16 = jax.block_until_ready(linear_res_block(x, p_bf16))
    assert out_bf16.shape == (B, dim_out)
    assert jnp.allclose(out_bf16, ref, atol=2e-2, rtol=2e-2)

    print("KERNEL_OK")
</pallas_src>

<mosaic_0001>
module attributes {stable_mosaic.version = 11 : i64} {
  func.func @_linear_res_block_kernel(%arg0: i32, %arg1: memref<8x128xf32, #tpu.memory_space<vmem>>, %arg2: memref<128x128xf32, #tpu.memory_space<vmem>>, %arg3: memref<1x128xf32, #tpu.memory_space<vmem>>, %arg4: memref<128x128xf32, #tpu.memory_space<vmem>>, %arg5: memref<1x128xf32, #tpu.memory_space<vmem>>, %arg6: memref<128x128xf32, #tpu.memory_space<vmem>>, %arg7: memref<1x128xf32, #tpu.memory_space<vmem>>, %arg8: memref<8x128xf32, #tpu.memory_space<vmem>>) attributes {dimension_semantics = [#tpu.dimension_semantics<parallel>], iteration_bounds = array<i64: 1>, scalar_prefetch = 0 : i64, scratch_operands = 0 : i64, tpu.core_type = #tpu.core_type<tc>, window_params = [{transform_indices = @transform_0, window_bounds = array<i64: 8, 128>}, {pipeline_mode = #tpu.pipeline_mode<synchronous>, transform_indices = @transform_1, window_bounds = array<i64: 128, 128>}, {pipeline_mode = #tpu.pipeline_mode<synchronous>, transform_indices = @transform_2, window_bounds = array<i64: 1, 128>}, {pipeline_mode = #tpu.pipeline_mode<synchronous>, transform_indices = @transform_3, window_bounds = array<i64: 128, 128>}, {pipeline_mode = #tpu.pipeline_mode<synchronous>, transform_indices = @transform_4, window_bounds = array<i64: 1, 128>}, {pipeline_mode = #tpu.pipeline_mode<synchronous>, transform_indices = @transform_5, window_bounds = array<i64: 128, 128>}, {pipeline_mode = #tpu.pipeline_mode<synchronous>, transform_indices = @transform_6, window_bounds = array<i64: 1, 128>}, {transform_indices = @transform_7, window_bounds = array<i64: 8, 128>}]} {
    %c0 = arith.constant 0 : index
    %c0_0 = arith.constant 0 : index
    %0 = vector.load %arg1[%c0, %c0_0] : memref<8x128xf32, #tpu.memory_space<vmem>>, vector<8x128xf32>
    %c0_1 = arith.constant 0 : index
    %c0_2 = arith.constant 0 : index
    %1 = vector.load %arg2[%c0_1, %c0_2] : memref<128x128xf32, #tpu.memory_space<vmem>>, vector<128x128xf32>
    %cst = arith.constant dense<0.000000e+00> : vector<8x128xf32>
    %2 = tpu.matmul %0, %1, %cst {dimension_numbers = #tpu.dot_dimension_numbers<[1], [0], [0], [1], [0, 0, 1, 1], [], []>} : vector<8x128xf32>, vector<128x128xf32>, vector<8x128xf32> -> vector<8x128xf32>
    %c0_3 = arith.constant 0 : index
    %c0_4 = arith.constant 0 : index
    %3 = vector.load %arg3[%c0_3, %c0_4] : memref<1x128xf32, #tpu.memory_space<vmem>>, vector<1x128xf32>
    %4 = vector.broadcast %3 : vector<1x128xf32> to vector<8x128xf32>
    %5 = arith.addf %2, %4 : vector<8x128xf32>
    %cst_5 = arith.constant 0.000000e+00 : f32
    %6 = vector.broadcast %cst_5 : f32 to vector<8x128xf32>
    %7 = arith.subf %6, %5 : vector<8x128xf32>
    %8 = math.exp %7 : vector<8x128xf32>
    %cst_6 = arith.constant 1.000000e+00 : f32
    %9 = vector.broadcast %cst_6 : f32 to vector<8x128xf32>
    %10 = arith.addf %9, %8 : vector<8x128xf32>
    %11 = tpu.reciprocal %10 : vector<8x128xf32> -> vector<8x128xf32>
    %12 = arith.mulf %5, %11 : vector<8x128xf32>
    %c0_7 = arith.constant 0 : index
    %c0_8 = arith.constant 0 : index
    %13 = vector.load %arg4[%c0_7, %c0_8] : memref<128x128xf32, #tpu.memory_space<vmem>>, vector<128x128xf32>
    %cst_9 = arith.constant dense<0.000000e+00> : vector<8x128xf32>
    %14 = tpu.matmul %12, %13, %cst_9 {dimension_numbers = #tpu.dot_dimension_numbers<[1], [0], [0], [1], [0, 0, 1, 1], [], []>} : vector<8x128xf32>, vector<128x128xf32>, vector<8x128xf32> -> vector<8x128xf32>
    %c0_10 = arith.constant 0 : index
    %c0_11 = arith.constant 0 : index
    %15 = vector.load %arg5[%c0_10, %c0_11] : memref<1x128xf32, #tpu.memory_space<vmem>>, vector<1x128xf32>
    %16 = vector.broadcast %15 : vector<1x128xf32> to vector<8x128xf32>
    %17 = arith.addf %14, %16 : vector<8x128xf32>
    %cst_12 = arith.constant 0.000000e+00 : f32
    %18 = vector.broadcast %cst_12 : f32 to vector<8x128xf32>
    %19 = arith.subf %18, %17 : vector<8x128xf32>
    %20 = math.exp %19 : vector<8x128xf32>
    %cst_13 = arith.constant 1.000000e+00 : f32
    %21 = vector.broadcast %cst_13 : f32 to vector<8x128xf32>
    %22 = arith.addf %21, %20 : vector<8x128xf32>
    %23 = tpu.reciprocal %22 : vector<8x128xf32> -> vector<8x128xf32>
    %24 = arith.mulf %17, %23 : vector<8x128xf32>
    %c0_14 = arith.constant 0 : index
    %c0_15 = arith.constant 0 : index
    %25 = vector.load %arg6[%c0_14, %c0_15] : memref<128x128xf32, #tpu.memory_space<vmem>>, vector<128x128xf32>
    %cst_16 = arith.constant dense<0.000000e+00> : vector<8x128xf32>
    %26 = tpu.matmul %0, %25, %cst_16 {dimension_numbers = #tpu.dot_dimension_numbers<[1], [0], [0], [1], [0, 0, 1, 1], [], []>} : vector<8x128xf32>, vector<128x128xf32>, vector<8x128xf32> -> vector<8x128xf32>
    %27 = arith.addf %24, %26 : vector<8x128xf32>
    %c0_17 = arith.constant 0 : index
    %c0_18 = arith.constant 0 : index
    %28 = vector.load %arg7[%c0_17, %c0_18] : memref<1x128xf32, #tpu.memory_space<vmem>>, vector<1x128xf32>
    %29 = vector.broadcast %28 : vector<1x128xf32> to vector<8x128xf32>
    %30 = arith.addf %27, %29 : vector<8x128xf32>
    %c0_19 = arith.constant 0 : index
    %c0_20 = arith.constant 0 : index
    %31 = vector.load %arg8[%c0_19, %c0_20] : memref<8x128xf32, #tpu.memory_space<vmem>>, vector<8x128xf32>
    tpu.vector_store %arg8[%c0_19, %c0_20], %30 {strides = array<i32>} : memref<8x128xf32, #tpu.memory_space<vmem>>, vector<8x128xf32>,
    return
  }
  func.func @transform_0(%arg0: i32) -> (i32, i32) {
    %c0_i32 = arith.constant 0 : i32
    %c0_i32_0 = arith.constant 0 : i32
    return %arg0, %c0_i32 : i32, i32
  }
  func.func @transform_1(%arg0: i32) -> (i32, i32) {
    %c0_i32 = arith.constant 0 : i32
    %c0_i32_0 = arith.constant 0 : i32
    %c0_i32_1 = arith.constant 0 : i32
    return %c0_i32, %c0_i32_0 : i32, i32
  }
  func.func @transform_2(%arg0: i32) -> (i32, i32) {
    %c0_i32 = arith.constant 0 : i32
    %c0_i32_0 = arith.constant 0 : i32
    %c0_i32_1 = arith.constant 0 : i32
    return %c0_i32, %c0_i32_0 : i32, i32
  }
  func.func @transform_3(%arg0: i32) -> (i32, i32) {
    %c0_i32 = arith.constant 0 : i32
    %c0_i32_0 = arith.constant 0 : i32
    %c0_i32_1 = arith.constant 0 : i32
    return %c0_i32, %c0_i32_0 : i32, i32
  }
  func.func @transform_4(%arg0: i32) -> (i32, i32) {
    %c0_i32 = arith.constant 0 : i32
    %c0_i32_0 = arith.constant 0 : i32
    %c0_i32_1 = arith.constant 0 : i32
    return %c0_i32, %c0_i32_0 : i32, i32
  }
  func.func @transform_5(%arg0: i32) -> (i32, i32) {
    %c0_i32 = arith.constant 0 : i32
    %c0_i32_0 = arith.constant 0 : i32
    %c0_i32_1 = arith.constant 0 : i32
    return %c0_i32, %c0_i32_0 : i32, i32
  }
  func.func @transform_6(%arg0: i32) -> (i32, i32) {
    %c0_i32 = arith.constant 0 : i32
    %c0_i32_0 = arith.constant 0 : i32
    %c0_i32_1 = arith.constant 0 : i32
    return %c0_i32, %c0_i32_0 : i32, i32
  }
  func.func @transform_7(%arg0: i32) -> (i32, i32) {
    %c0_i32 = arith.constant 0 : i32
    %c0_i32_0 = arith.constant 0 : i32
    return %arg0, %c0_i32 : i32, i32
  }
}

module attributes {stable_mosaic.version = 11 : i64} {
  func.func @_linear_res_block_kernel(%arg0: i32, %arg1: memref<8x128xf32, #tpu.memory_space<vmem>>, %arg2: memref<128x128xf32, #tpu.memory_space<vmem>>, %arg3: memref<1x128xf32, #tpu.memory_space<vmem>>, %arg4: memref<128x128xf32, #tpu.memory_space<vmem>>, %arg5: memref<1x128xf32, #tpu.memory_space<vmem>>, %arg6: memref<128x128xf32, #tpu.memory_space<vmem>>, %arg7: memref<1x128xf32, #tpu.memory_space<vmem>>, %arg8: memref<8x128xf32, #tpu.memory_space<vmem>>) attributes {dimension_semantics = [#tpu.dimension_semantics<parallel>], iteration_bounds = array<i64: 1>, scalar_prefetch = 0 : i64, scratch_operands = 0 : i64, tpu.core_type = #tpu.core_type<tc>, window_params = [{transform_indices = @transform_0, window_bounds = array<i64: 8, 128>}, {pipeline_mode = #tpu.pipeline_mode<synchronous>, transform_indices = @transform_1, window_bounds = array<i64: 128, 128>}, {pipeline_mode = #tpu.pipeline_mode<synchronous>, transform_indices = @transform_2, window_bounds = array<i64: 1, 128>}, {pipeline_mode = #tpu.pipeline_mode<synchronous>, transform_indices = @transform_3, window_bounds = array<i64: 128, 128>}, {pipeline_mode = #tpu.pipeline_mode<synchronous>, transform_indices = @transform_4, window_bounds = array<i64: 1, 128>}, {pipeline_mode = #tpu.pipeline_mode<synchronous>, transform_indices = @transform_5, window_bounds = array<i64: 128, 128>}, {pipeline_mode = #tpu.pipeline_mode<synchronous>, transform_indices = @transform_6, window_bounds = array<i64: 1, 128>}, {transform_indices = @transform_7, window_bounds = array<i64: 8, 128>}]} {
    %c0 = arith.constant 0 : index
    %c0_0 = arith.constant 0 : index
    %0 = vector.load %arg1[%c0, %c0_0] : memref<8x128xf32, #tpu.memory_space<vmem>>, vector<8x128xf32>
    %c0_1 = arith.constant 0 : index
    %c0_2 = arith.constant 0 : index
    %1 = vector.load %arg2[%c0_1, %c0_2] : memref<128x128xf32, #tpu.memory_space<vmem>>, vector<128x128xf32>
    %cst = arith.constant dense<0.000000e+00> : vector<8x128xf32>
    %2 = tpu.matmul %0, %1, %cst {dimension_numbers = #tpu.dot_dimension_numbers<[1], [0], [0], [1], [0, 0, 1, 1], [], []>} : vector<8x128xf32>, vector<128x128xf32>, vector<8x128xf32> -> vector<8x128xf32>
    %c0_3 = arith.constant 0 : index
    %c0_4 = arith.constant 0 : index
    %3 = vector.load %arg3[%c0_3, %c0_4] : memref<1x128xf32, #tpu.memory_space<vmem>>, vector<1x128xf32>
    %4 = vector.broadcast %3 : vector<1x128xf32> to vector<8x128xf32>
    %5 = arith.addf %2, %4 : vector<8x128xf32>
    %cst_5 = arith.constant 0.000000e+00 : f32
    %6 = vector.broadcast %cst_5 : f32 to vector<8x128xf32>
    %7 = arith.subf %6, %5 : vector<8x128xf32>
    %8 = math.exp %7 : vector<8x128xf32>
    %cst_6 = arith.constant 1.000000e+00 : f32
    %9 = vector.broadcast %cst_6 : f32 to vector<8x128xf32>
    %10 = arith.addf %9, %8 : vector<8x128xf32>
    %11 = tpu.reciprocal %10 : vector<8x128xf32> -> vector<8x128xf32>
    %12 = arith.mulf %5, %11 : vector<8x128xf32>
    %c0_7 = arith.constant 0 : index
    %c0_8 = arith.constant 0 : index
    %13 = vector.load %arg4[%c0_7, %c0_8] : memref<128x128xf32, #tpu.memory_space<vmem>>, vector<128x128xf32>
    %cst_9 = arith.constant dense<0.000000e+00> : vector<8x128xf32>
    %14 = tpu.matmul %12, %13, %cst_9 {dimension_numbers = #tpu.dot_dimension_numbers<[1], [0], [0], [1], [0, 0, 1, 1], [], []>} : vector<8x128xf32>, vector<128x128xf32>, vector<8x128xf32> -> vector<8x128xf32>
    %c0_10 = arith.constant 0 : index
    %c0_11 = arith.constant 0 : index
    %15 = vector.load %arg5[%c0_10, %c0_11] : memref<1x128xf32, #tpu.memory_space<vmem>>, vector<1x128xf32>
    %16 = vector.broadcast %15 : vector<1x128xf32> to vector<8x128xf32>
    %17 = arith.addf %14, %16 : vector<8x128xf32>
    %cst_12 = arith.constant 0.000000e+00 : f32
    %18 = vector.broadcast %cst_12 : f32 to vector<8x128xf32>
    %19 = arith.subf %18, %17 : vector<8x128xf32>
    %20 = math.exp %19 : vector<8x128xf32>
    %cst_13 = arith.constant 1.000000e+00 : f32
    %21 = vector.broadcast %cst_13 : f32 to vector<8x128xf32>
    %22 = arith.addf %21, %20 : vector<8x128xf32>
    %23 = tpu.reciprocal %22 : vector<8x128xf32> -> vector<8x128xf32>
    %24 = arith.mulf %17, %23 : vector<8x128xf32>
    %c0_14 = arith.constant 0 : index
    %c0_15 = arith.constant 0 : index
    %25 = vector.load %arg6[%c0_14, %c0_15] : memref<128x128xf32, #tpu.memory_space<vmem>>, vector<128x128xf32>
    %cst_16 = arith.constant dense<0.000000e+00> : vector<8x128xf32>
    %26 = tpu.matmul %0, %25, %cst_16 {dimension_numbers = #tpu.dot_dimension_numbers<[1], [0], [0], [1], [0, 0, 1, 1], [], []>} : vector<8x128xf32>, vector<128x128xf32>, vector<8x128xf32> -> vector<8x128xf32>
    %27 = arith.addf %24, %26 : vector<8x128xf32>
    %c0_17 = arith.constant 0 : index
    %c0_18 = arith.constant 0 : index
    %28 = vector.load %arg7[%c0_17, %c0_18] : memref<1x128xf32, #tpu.memory_space<vmem>>, vector<1x128xf32>
    %29 = vector.broadcast %28 : vector<1x128xf32> to vector<8x128xf32>
    %30 = arith.addf %27, %29 : vector<8x128xf32>
    %c0_19 = arith.constant 0 : index
    %c0_20 = arith.constant 0 : index
    %31 = vector.load %arg8[%c0_19, %c0_20] : memref<8x128xf32, #tpu.memory_space<vmem>>, vector<8x128xf32>
    tpu.vector_store %arg8[%c0_19, %c0_20], %30 {strides = array<i32>} : memref<8x128xf32, #tpu.memory_space<vmem>>, vector<8x128xf32>,
    return
  }
  func.func @transform_0(%arg0: i32) -> (i32, i32) {
    %c0_i32 = arith.constant 0 : i32
    %c0_i32_0 = arith.constant 0 : i32
    return %arg0, %c0_i32 : i32, i32
  }
  func.func @transform_1(%arg0: i32) -> (i32, i32) {
    %c0_i32 = arith.constant 0 : i32
    %c0_i32_0 = arith.constant 0 : i32
    %c0_i32_1 = arith.constant 0 : i32
    return %c0_i32, %c0_i32_0 : i32, i32
  }
  func.func @transform_2(%arg0: i32) -> (i32, i32) {
    %c0_i32 = arith.constant 0 : i32
    %c0_i32_0 = arith.constant 0 : i32
    %c0_i32_1 = arith.constant 0 : i32
    return %c0_i32, %c0_i32_0 : i32, i32
  }
  func.func @transform_3(%arg0: i32) -> (i32, i32) {
    %c0_i32 = arith.constant 0 : i32
    %c0_i32_0 = arith.constant 0 : i32
    %c0_i32_1 = arith.constant 0 : i32
    return %c0_i32, %c0_i32_0 : i32, i32
  }
  func.func @transform_4(%arg0: i32) -> (i32, i32) {
    %c0_i32 = arith.constant 0 : i32
    %c0_i32_0 = arith.constant 0 : i32
    %c0_i32_1 = arith.constant 0 : i32
    return %c0_i32, %c0_i32_0 : i32, i32
  }
  func.func @transform_5(%arg0: i32) -> (i32, i32) {
    %c0_i32 = arith.constant 0 : i32
    %c0_i32_0 = arith.constant 0 : i32
    %c0_i32_1 = arith.constant 0 : i32
    return %c0_i32, %c0_i32_0 : i32, i32
  }
  func.func @transform_6(%arg0: i32) -> (i32, i32) {
    %c0_i32 = arith.constant 0 : i32
    %c0_i32_0 = arith.constant 0 : i32
    %c0_i32_1 = arith.constant 0 : i32
    return %c0_i32, %c0_i32_0 : i32, i32
  }
  func.func @transform_7(%arg0: i32) -> (i32, i32) {
    %c0_i32 = arith.constant 0 : i32
    %c0_i32_0 = arith.constant 0 : i32
    return %arg0, %c0_i32 : i32, i32
  }
}

</mosaic_0001>

<llo_original>
// kernel: tpu_custom_call.1
$region0: #{tpu_custom_call.1}
  #allocation0 [shape = 'u32[]', space=smem, size = 0x4, offset = 0x4, fixed_abs, tag = 'smem constant byte address 0x4 - core index']
  #allocation1 [shape = 'u32[144,128]{1,0:T(1,128)}', space=vmem, size = 0x12000, scoped, tag = 'internal scratch']
  %s0 = inlined_call_operand.hbm [shape: f32[8,128], index: 0, kind: input, shape index: {}]
  %s1 = inlined_call_operand.hbm [shape: f32[128,128], index: 1, kind: input, shape index: {}]
  %s2 = inlined_call_operand.hbm [shape: f32[1,128], index: 2, kind: input, shape index: {}]
  %s3 = inlined_call_operand.hbm [shape: f32[128,128], index: 3, kind: input, shape index: {}]
  %s4 = inlined_call_operand.hbm [shape: f32[1,128], index: 4, kind: input, shape index: {}]
  %s5 = inlined_call_operand.hbm [shape: f32[128,128], index: 5, kind: input, shape index: {}]
  %s6 = inlined_call_operand.hbm [shape: f32[1,128], index: 6, kind: input, shape index: {}]
  %s7 = inlined_call_operand.hbm [shape: f32[8,128], index: 7, kind: output, shape index: {}]
  %s8 = sld [smem:[#allocation0]]
  $region66: #{tpu_custom_call.1} parent=0
    _
  %s10 = ssub.s32 1, %s8
  %s11 = scalar_select 0, %s10, %s8
  $region1: #{tpu_custom_call.1} parent=0
    #allocation2 [shape = 'u8[4096]{0}', space=vmem, size = 0x1000, scoped, tag = 'input window, operand 0, single buffered']
    #allocation3 [shape = 's32[1]{0}', space=sflag, size = 0x4, scoped, tag = 'scoped memory for tpu_custom_call.1']
    #allocation4 [shape = 's32[1]{0}', space=sflag, size = 0x4, scoped, tag = 'scoped memory for tpu_custom_call.1']
    #allocation5 [shape = 'u8[65536]{0}', space=vmem, size = 0x10000, scoped, tag = 'input window, operand 1, single buffered']
    #allocation6 [shape = 's32[1]{0}', space=sflag, size = 0x4, scoped, tag = 'scoped memory for tpu_custom_call.1']
    #allocation7 [shape = 'u8[512]{0}', space=vmem, size = 0x400, scoped, tag = 'input window, operand 2, single buffered']
    #allocation8 [shape = 'u8[65536]{0}', space=vmem, size = 0x10000, scoped, tag = 'input window, operand 3, single buffered']
    #allocation9 [shape = 's32[1]{0}', space=sflag, size = 0x4, scoped, tag = 'scoped memory for tpu_custom_call.1']
    #allocation10 [shape = 'u8[512]{0}', space=vmem, size = 0x400, scoped, tag = 'input window, operand 4, single buffered']
    #allocation11 [shape = 'u8[65536]{0}', space=vmem, size = 0x10000, scoped, tag = 'input window, operand 5, single buffered']
    #allocation12 [shape = 's32[1]{0}', space=sflag, size = 0x4, scoped, tag = 'scoped memory for tpu_custom_call.1']
    #allocation13 [shape = 'u8[512]{0}', space=vmem, size = 0x400, scoped, tag = 'input window, operand 6, single buffered']
    #allocation14 [shape = 'u8[4096]{0}', space=vmem, size = 0x1000, scoped, tag = 'output window, operand 0, single buffered']
    %12 = vsyncpa [#allocation3], 0
    %13 = vsyncpa [#allocation6], 0
    %14 = vsyncpa [#allocation9], 0
    %15 = vsyncpa [#allocation12], 0
    %16 = vsyncpa [#allocation4], 0
    // Predicated region
    $region2: #{tpu_custom_call.1} parent=1 // pred_check
      _
    $region3: #{tpu_custom_call.1} parent=1 // pred_check_branch
      %18 = sbr.rel (0) target = $region5
    $region4: #{tpu_custom_call.1} parent=1 // pred_region
      %s20 = ssub.s32 128, 128
      %21 = vsyncadd [#allocation3], %s20
      %s23 = sshll.u32 [#allocation2], 4
      %s24 = int_to_ptr.vmem [resolvable:$true] %s23
      %26 = dma.hbm_to_vmem [thread:$0]  %s0, 128, %s24, [#allocation3]
    $region5: #{tpu_custom_call.1} parent=1 // pred_fallthru
      _
    // Predicated region
    $region6: #{tpu_custom_call.1} parent=1 // pred_check
      _
    $region7: #{tpu_custom_call.1} parent=1 // pred_check_branch
      %28 = sbr.rel (0) target = $region9
    $region8: #{tpu_custom_call.1} parent=1 // pred_region
      %s30 = ssub.s32 2048, 2048
      %31 = vsyncadd [#allocation6], %s30
      %s32 = sshll.u32 [#allocation5], 4
      %s33 = int_to_ptr.vmem [resolvable:$true] %s32
      %38 = dma.hbm_to_vmem [thread:$0]  %s1, 2048, %s33, [#allocation6], 128, 128, 8
    $region9: #{tpu_custom_call.1} parent=1 // pred_fallthru
      _
    // Predicated region
    $region10: #{tpu_custom_call.1} parent=1 // pred_check
      _
    $region11: #{tpu_custom_call.1} parent=1 // pred_check_branch
      %40 = sbr.rel (0) target = $region13
    $region12: #{tpu_custom_call.1} parent=1 // pred_region
      %s42 = ssub.s32 16, 16
      %43 = vsyncadd [#allocation6], %s42
      %s45 = sshll.u32 [#allocation7], 4
      %s46 = int_to_ptr.vmem [resolvable:$true] %s45
      %48 = dma.hbm_to_vmem [thread:$0]  %s2, 16, %s46, [#allocation6]
    $region13: #{tpu_custom_call.1} parent=1 // pred_fallthru
      _
    // Predicated region
    $region14: #{tpu_custom_call.1} parent=1 // pred_check
      _
    $region15: #{tpu_custom_call.1} parent=1 // pred_check_branch
      %50 = sbr.rel (0) target = $region17
    $region16: #{tpu_custom_call.1} parent=1 // pred_region
      %s52 = ssub.s32 2048, 2048
      %53 = vsyncadd [#allocation9], %s52
      %s54 = sshll.u32 [#allocation8], 4
      %s55 = int_to_ptr.vmem [resolvable:$true] %s54
      %60 = dma.hbm_to_vmem [thread:$0]  %s3, 2048, %s55, [#allocation9], 128, 128, 8
    $region17: #{tpu_custom_call.1} parent=1 // pred_fallthru
      _
    // Predicated region
    $region18: #{tpu_custom_call.1} parent=1 // pred_check
      _
    $region19: #{tpu_custom_call.1} parent=1 // pred_check_branch
      %62 = sbr.rel (0) target = $region21
    $region20: #{tpu_custom_call.1} parent=1 // pred_region
      %s64 = ssub.s32 16, 16
      %65 = vsyncadd [#allocation9], %s64
      %s67 = sshll.u32 [#allocation10], 4
      %s68 = int_to_ptr.vmem [resolvable:$true] %s67
      %70 = dma.hbm_to_vmem [thread:$0]  %s4, 16, %s68, [#allocation9]
    $region21: #{tpu_custom_call.1} parent=1 // pred_fallthru
      _
    // Predicated region
    $region22: #{tpu_custom_call.1} parent=1 // pred_check
      _
    $region23: #{tpu_custom_call.1} parent=1 // pred_check_branch
      %72 = sbr.rel (0) target = $region25
    $region24: #{tpu_custom_call.1} parent=1 // pred_region
      %s74 = ssub.s32 2048, 2048
      %75 = vsyncadd [#allocation12], %s74
      %s76 = sshll.u32 [#allocation11], 4
      %s77 = int_to_ptr.vmem [resolvable:$true] %s76
      %82 = dma.hbm_to_vmem [thread:$0]  %s5, 2048, %s77, [#allocation12], 128, 128, 8
    $region25: #{tpu_custom_call.1} parent=1 // pred_fallthru
      _
    // Predicated region
    $region26: #{tpu_custom_call.1} parent=1 // pred_check
      _
    $region27: #{tpu_custom_call.1} parent=1 // pred_check_branch
      %84 = sbr.rel (0) target = $region29
    $region28: #{tpu_custom_call.1} parent=1 // pred_region
      %s86 = ssub.s32 16, 16
      %87 = vsyncadd [#allocation12], %s86
      %s89 = sshll.u32 [#allocation13], 4
      %s90 = int_to_ptr.vmem [resolvable:$true] %s89
      %92 = dma.hbm_to_vmem [thread:$0]  %s6, 16, %s90, [#allocation12]
    $region29: #{tpu_custom_call.1} parent=1 // pred_fallthru
      _
    // Predicated region
    $region30: #{tpu_custom_call.1} parent=1 // pred_check
      _
    $region31: #{tpu_custom_call.1} parent=1 // pred_check_branch
      %94 = sbr.rel (0) target = $region33
    $region32: #{tpu_custom_call.1} parent=1 // pred_region
      %95 = dma.done [#allocation3], 128
    $region33: #{tpu_custom_call.1} parent=1 // pred_fallthru
      _
    // Predicated region
    $region34: #{tpu_custom_call.1} parent=1 // pred_check
      _
    $region35: #{tpu_custom_call.1} parent=1 // pred_check_branch
      %97 = sbr.rel (0) target = $region37
    $region36: #{tpu_custom_call.1} parent=1 // pred_region
      %98 = dma.done [#allocation6], 2048
    $region37: #{tpu_custom_call.1} parent=1 // pred_fallthru
      _
    // Predicated region
    $region38: #{tpu_custom_call.1} parent=1 // pred_check
      _
    $region39: #{tpu_custom_call.1} parent=1 // pred_check_branch
      %100 = sbr.rel (0) target = $region41
    $region40: #{tpu_custom_call.1} parent=1 // pred_region
      %101 = dma.done [#allocation6], 16
    $region41: #{tpu_custom_call.1} parent=1 // pred_fallthru
      _
    // Predicated region
    $region42: #{tpu_custom_call.1} parent=1 // pred_check
      _
    $region43: #{tpu_custom_call.1} parent=1 // pred_check_branch
      %103 = sbr.rel (0) target = $region45
    $region44: #{tpu_custom_call.1} parent=1 // pred_region
      %104 = dma.done [#allocation9], 2048
    $region45: #{tpu_custom_call.1} parent=1 // pred_fallthru
      _
    // Predicated region
    $region46: #{tpu_custom_call.1} parent=1 // pred_check
      _
    $region47: #{tpu_custom_call.1} parent=1 // pred_check_branch
      %106 = sbr.rel (0) target = $region49
    $region48: #{tpu_custom_call.1} parent=1 // pred_region
      %107 = dma.done [#allocation9], 16
    $region49: #{tpu_custom_call.1} parent=1 // pred_fallthru
      _
    // Predicated region
    $region50: #{tpu_custom_call.1} parent=1 // pred_check
      _
    $region51: #{tpu_custom_call.1} parent=1 // pred_check_branch
      %109 = sbr.rel (0) target = $region53
    $region52: #{tpu_custom_call.1} parent=1 // pred_region
      %110 = dma.done [#allocation12], 2048
    $region53: #{tpu_custom_call.1} parent=1 // pred_fallthru
      _
    // Predicated region
    $region54: #{tpu_custom_call.1} parent=1 // pred_check
      _
    $region55: #{tpu_custom_call.1} parent=1 // pred_check_branch
      %112 = sbr.rel (0) target = $region57
    $region56: #{tpu_custom_call.1} parent=1 // pred_region
      %113 = dma.done [#allocation12], 16
    $region57: #{tpu_custom_call.1} parent=1 // pred_fallthru
      _
    %v114 = vld [vmem:[#allocation2] sm:$0xff]
    %v115 = vld [vmem:[#allocation5] sm:$0xff]
    %v116 = vld [vmem:[#allocation5 + $0x8] sm:$0xff]
    %v117 = vld [vmem:[#allocation5 + $0x10] sm:$0xff]
    %v118 = vld [vmem:[#allocation5 + $0x18] sm:$0xff]
    %v119 = vld [vmem:[#allocation5 + $0x20] sm:$0xff]
    %v120 = vld [vmem:[#allocation5 + $0x28] sm:$0xff]
    %v121 = vld [vmem:[#allocation5 + $0x30] sm:$0xff]
    %v122 = vld [vmem:[#allocation5 + $0x38] sm:$0xff]
    %v123 = vld [vmem:[#allocation5 + $0x40] sm:$0xff]
    %v124 = vld [vmem:[#allocation5 + $0x48] sm:$0xff]
    %v125 = vld [vmem:[#allocation5 + $0x50] sm:$0xff]
    %v126 = vld [vmem:[#allocation5 + $0x58] sm:$0xff]
    %v127 = vld [vmem:[#allocation5 + $0x60] sm:$0xff]
    %v128 = vld [vmem:[#allocation5 + $0x68] sm:$0xff]
    %v129 = vld [vmem:[#allocation5 + $0x70] sm:$0xff]
    %v130 = vld [vmem:[#allocation5 + $0x78] sm:$0xff]
    %v131 = vld [vmem:[#allocation7] sm:$0x1]
    %v133 = vlaneseq
    %v134 = vshrl.u32 %v133, 7
    %v135 = vsub.s32 0, %v134
    %v136 = vrot.slane %v131, %v135
    %138 = vmatprep.subr.mxu0 0.0
    %139 = vmatpush1.msra.mxu0 %v115
    %140 = vmatprep.subr.mxu0 0.0
    %141 = vmatpush1.msra.mxu0 %v116
    %142 = vmatprep.subr.mxu0 0.0
    %143 = vmatpush1.msra.mxu0 %v117
    %144 = vmatprep.subr.mxu0 0.0
    %145 = vmatpush1.msra.mxu0 %v118
    %146 = vmatprep.subr.mxu0 0.0
    %147 = vmatpush1.msra.mxu0 %v119
    %148 = vmatprep.subr.mxu0 0.0
    %149 = vmatpush1.msra.mxu0 %v120
    %150 = vmatprep.subr.mxu0 0.0
    %151 = vmatpush1.msra.mxu0 %v121
    %152 = vmatprep.subr.mxu0 0.0
    %153 = vmatpush1.msra.mxu0 %v122
    %154 = vmatprep.subr.mxu0 0.0
    %155 = vmatpush1.msra.mxu0 %v123
    %156 = vmatprep.subr.mxu0 0.0
    %157 = vmatpush1.msra.mxu0 %v124
    %158 = vmatprep.subr.mxu0 0.0
    %159 = vmatpush1.msra.mxu0 %v125
    %160 = vmatprep.subr.mxu0 0.0
    %161 = vmatpush1.msra.mxu0 %v126
    %162 = vmatprep.subr.mxu0 0.0
    %163 = vmatpush1.msra.mxu0 %v127
    %164 = vmatprep.subr.mxu0 0.0
    %165 = vmatpush1.msra.mxu0 %v128
    %166 = vmatprep.subr.mxu0 0.0
    %167 = vmatpush1.msra.mxu0 %v129
    %168 = vmatprep.subr.mxu0 0.0
    %169 = vmatpush1.msra.mxu0 %v130
    %170 = vmatprep.subr.mxu0 0.0
    %171 = vmatpush1.msra.mxu0 0.0
    %172 = vmatprep.subr.mxu0 0.0
    %173 = vmatpush1.msra.mxu0 0.0
    %174 = vmatprep.subr.mxu0 0.0
    %175 = vmatpush1.msra.mxu0 0.0
    %176 = vmatprep.subr.mxu0 0.0
    %177 = vmatpush1.msra.mxu0 0.0
    %178 = vmatprep.subr.mxu0 0.0
    %179 = vmatpush1.msra.mxu0 0.0
    %180 = vmatprep.subr.mxu0 0.0
    %181 = vmatpush1.msra.mxu0 0.0
    %182 = vmatprep.subr.mxu0 0.0
    %183 = vmatpush1.msra.mxu0 0.0
    %184 = vmatprep.subr.mxu0 0.0
    %185 = vmatpush1.msra.mxu0 0.0
    %186 = vmatprep.subr.mxu0 0.0
    %187 = vmatpush1.msra.mxu0 0.0
    %188 = vmatprep.subr.mxu0 0.0
    %189 = vmatpush1.msra.mxu0 0.0
    %190 = vmatprep.subr.mxu0 0.0
    %191 = vmatpush1.msra.mxu0 0.0
    %192 = vmatprep.subr.mxu0 0.0
    %193 = vmatpush1.msra.mxu0 0.0
    %194 = vmatprep.subr.mxu0 0.0
    %195 = vmatpush1.msra.mxu0 0.0
    %196 = vmatprep.subr.mxu0 0.0
    %197 = vmatpush1.msra.mxu0 0.0
    %198 = vmatprep.subr.mxu0 0.0
    %199 = vmatpush1.msra.mxu0 0.0
    %200 = vmatprep.subr.mxu0 0.0
    %201 = vmatpush1.msra.mxu0 0.0
    %202 = vmatprep.mubr.f32.mxu0 0.0
    %203 = vmatmul.mubr.f32.gmra.mrb[0].mxu0 %v114
    %v204 = vpop.f32.mrb[0].mxu0
    %v205 = vadd.f32 %v136, %v204
    %v206 = vpop.f32.mrb[0].mxu0
    %207 = vdwg.mxu0
    %v208 = vsub.f32 0.0, %v205
    %v209 = vmul.f32 %v208, 1.442695
    %v210 = vpow.pop %v209
    %v211 = vadd.f32 %v210, 1.0
    %v212 = vrcp.pop %v211
    %v213 = vmul.f32 %v205, %v212
    %v214 = vld [vmem:[#allocation8] sm:$0xff]
    %v215 = vld [vmem:[#allocation8 + $0x8] sm:$0xff]
    %v216 = vld [vmem:[#allocation8 + $0x10] sm:$0xff]
    %v217 = vld [vmem:[#allocation8 + $0x18] sm:$0xff]
    %v218 = vld [vmem:[#allocation8 + $0x20] sm:$0xff]
    %v219 = vld [vmem:[#allocation8 + $0x28] sm:$0xff]
    %v220 = vld [vmem:[#allocation8 + $0x30] sm:$0xff]
    %v221 = vld [vmem:[#allocation8 + $0x38] sm:$0xff]
    %v222 = vld [vmem:[#allocation8 + $0x40] sm:$0xff]
    %v223 = vld [vmem:[#allocation8 + $0x48] sm:$0xff]
    %v224 = vld [vmem:[#allocation8 + $0x50] sm:$0xff]
    %v225 = vld [vmem:[#allocation8 + $0x58] sm:$0xff]
    %v226 = vld [vmem:[#allocation8 + $0x60] sm:$0xff]
    %v227 = vld [vmem:[#allocation8 + $0x68] sm:$0xff]
    %v228 = vld [vmem:[#allocation8 + $0x70] sm:$0xff]
    %v229 = vld [vmem:[#allocation8 + $0x78] sm:$0xff]
    %v230 = vld [vmem:[#allocation10] sm:$0x1]
    %v232 = vlaneseq
    %v233 = vshrl.u32 %v232, 7
    %v234 = vsub.s32 0, %v233
    %v235 = vrot.slane %v230, %v234
    %237 = vmatprep.subr.mxu0 0.0
    %238 = vmatpush1.msra.mxu0 %v214
    %239 = vmatprep.subr.mxu0 0.0
    %240 = vmatpush1.msra.mxu0 %v215
    %241 = vmatprep.subr.mxu0 0.0
    %242 = vmatpush1.msra.mxu0 %v216
    %243 = vmatprep.subr.mxu0 0.0
    %244 = vmatpush1.msra.mxu0 %v217
    %245 = vmatprep.subr.mxu0 0.0
    %246 = vmatpush1.msra.mxu0 %v218
    %247 = vmatprep.subr.mxu0 0.0
    %248 = vmatpush1.msra.mxu0 %v219
    %249 = vmatprep.subr.mxu0 0.0
    %250 = vmatpush1.msra.mxu0 %v220
    %251 = vmatprep.subr.mxu0 0.0
    %252 = vmatpush1.msra.mxu0 %v221
    %253 = vmatprep.subr.mxu0 0.0
    %254 = vmatpush1.msra.mxu0 %v222
    %255 = vmatprep.subr.mxu0 0.0
    %256 = vmatpush1.msra.mxu0 %v223
    %257 = vmatprep.subr.mxu0 0.0
    %258 = vmatpush1.msra.mxu0 %v224
    %259 = vmatprep.subr.mxu0 0.0
    %260 = vmatpush1.msra.mxu0 %v225
    %261 = vmatprep.subr.mxu0 0.0
    %262 = vmatpush1.msra.mxu0 %v226
    %263 = vmatprep.subr.mxu0 0.0
    %264 = vmatpush1.msra.mxu0 %v227
    %265 = vmatprep.subr.mxu0 0.0
    %266 = vmatpush1.msra.mxu0 %v228
    %267 = vmatprep.subr.mxu0 0.0
    %268 = vmatpush1.msra.mxu0 %v229
    %269 = vmatprep.subr.mxu0 0.0
    %270 = vmatpush1.msra.mxu0 0.0
    %271 = vmatprep.subr.mxu0 0.0
    %272 = vmatpush1.msra.mxu0 0.0
    %273 = vmatprep.subr.mxu0 0.0
    %274 = vmatpush1.msra.mxu0 0.0
    %275 = vmatprep.subr.mxu0 0.0
    %276 = vmatpush1.msra.mxu0 0.0
    %277 = vmatprep.subr.mxu0 0.0
    %278 = vmatpush1.msra.mxu0 0.0
    %279 = vmatprep.subr.mxu0 0.0
    %280 = vmatpush1.msra.mxu0 0.0
    %281 = vmatprep.subr.mxu0 0.0
    %282 = vmatpush1.msra.mxu0 0.0
    %283 = vmatprep.subr.mxu0 0.0
    %284 = vmatpush1.msra.mxu0 0.0
    %285 = vmatprep.subr.mxu0 0.0
    %286 = vmatpush1.msra.mxu0 0.0
    %287 = vmatprep.subr.mxu0 0.0
    %288 = vmatpush1.msra.mxu0 0.0
    %289 = vmatprep.subr.mxu0 0.0
    %290 = vmatpush1.msra.mxu0 0.0
    %291 = vmatprep.subr.mxu0 0.0
    %292 = vmatpush1.msra.mxu0 0.0
    %293 = vmatprep.subr.mxu0 0.0
    %294 = vmatpush1.msra.mxu0 0.0
    %295 = vmatprep.subr.mxu0 0.0
    %296 = vmatpush1.msra.mxu0 0.0
    %297 = vmatprep.subr.mxu0 0.0
    %298 = vmatpush1.msra.mxu0 0.0
    %299 = vmatprep.subr.mxu0 0.0
    %300 = vmatpush1.msra.mxu0 0.0
    %301 = vmatprep.mubr.f32.mxu0 0.0
    %302 = vmatmul.mubr.f32.gmra.mrb[0].mxu0 %v213
    %v303 = vpop.f32.mrb[0].mxu0
    %v304 = vadd.f32 %v235, %v303
    %v305 = vpop.f32.mrb[0].mxu0
    %306 = vdwg.mxu0
    %v307 = vsub.f32 0.0, %v304
    %v308 = vmul.f32 %v307, 1.442695
    %v309 = vpow.pop %v308
    %v310 = vadd.f32 %v309, 1.0
    %v311 = vrcp.pop %v310
    %v312 = vmul.f32 %v304, %v311
    %v313 = vld [vmem:[#allocation11] sm:$0xff]
    %v314 = vld [vmem:[#allocation11 + $0x8] sm:$0xff]
    %v315 = vld [vmem:[#allocation11 + $0x10] sm:$0xff]
    %v316 = vld [vmem:[#allocation11 + $0x18] sm:$0xff]
    %v317 = vld [vmem:[#allocation11 + $0x20] sm:$0xff]
    %v318 = vld [vmem:[#allocation11 + $0x28] sm:$0xff]
    %v319 = vld [vmem:[#allocation11 + $0x30] sm:$0xff]
    %v320 = vld [vmem:[#allocation11 + $0x38] sm:$0xff]
    %v321 = vld [vmem:[#allocation11 + $0x40] sm:$0xff]
    %v322 = vld [vmem:[#allocation11 + $0x48] sm:$0xff]
    %v323 = vld [vmem:[#allocation11 + $0x50] sm:$0xff]
    %v324 = vld [vmem:[#allocation11 + $0x58] sm:$0xff]
    %v325 = vld [vmem:[#allocation11 + $0x60] sm:$0xff]
    %v326 = vld [vmem:[#allocation11 + $0x68] sm:$0xff]
    %v327 = vld [vmem:[#allocation11 + $0x70] sm:$0xff]
    %v328 = vld [vmem:[#allocation11 + $0x78] sm:$0xff]
    %329 = vmatprep.subr.mxu0 0.0
    %330 = vmatpush1.msra.mxu0 %v313
    %331 = vmatprep.subr.mxu0 0.0
    %332 = vmatpush1.msra.mxu0 %v314
    %333 = vmatprep.subr.mxu0 0.0
    %334 = vmatpush1.msra.mxu0 %v315
    %335 = vmatprep.subr.mxu0 0.0
    %336 = vmatpush1.msra.mxu0 %v316
    %337 = vmatprep.subr.mxu0 0.0
    %338 = vmatpush1.msra.mxu0 %v317
    %339 = vmatprep.subr.mxu0 0.0
    %340 = vmatpush1.msra.mxu0 %v318
    %341 = vmatprep.subr.mxu0 0.0
    %342 = vmatpush1.msra.mxu0 %v319
    %343 = vmatprep.subr.mxu0 0.0
    %344 = vmatpush1.msra.mxu0 %v320
    %345 = vmatprep.subr.mxu0 0.0
    %346 = vmatpush1.msra.mxu0 %v321
    %347 = vmatprep.subr.mxu0 0.0
    %348 = vmatpush1.msra.mxu0 %v322
    %349 = vmatprep.subr.mxu0 0.0
    %350 = vmatpush1.msra.mxu0 %v323
    %351 = vmatprep.subr.mxu0 0.0
    %352 = vmatpush1.msra.mxu0 %v324
    %353 = vmatprep.subr.mxu0 0.0
    %354 = vmatpush1.msra.mxu0 %v325
    %355 = vmatprep.subr.mxu0 0.0
    %356 = vmatpush1.msra.mxu0 %v326
    %357 = vmatprep.subr.mxu0 0.0
    %358 = vmatpush1.msra.mxu0 %v327
    %359 = vmatprep.subr.mxu0 0.0
    %360 = vmatpush1.msra.mxu0 %v328
    %361 = vmatprep.subr.mxu0 0.0
    %362 = vmatpush1.msra.mxu0 0.0
    %363 = vmatprep.subr.mxu0 0.0
    %364 = vmatpush1.msra.mxu0 0.0
    %365 = vmatprep.subr.mxu0 0.0
    %366 = vmatpush1.msra.mxu0 0.0
    %367 = vmatprep.subr.mxu0 0.0
    %368 = vmatpush1.msra.mxu0 0.0
    %369 = vmatprep.subr.mxu0 0.0
    %370 = vmatpush1.msra.mxu0 0.0
    %371 = vmatprep.subr.mxu0 0.0
    %372 = vmatpush1.msra.mxu0 0.0
    %373 = vmatprep.subr.mxu0 0.0
    %374 = vmatpush1.msra.mxu0 0.0
    %375 = vmatprep.subr.mxu0 0.0
    %376 = vmatpush1.msra.mxu0 0.0
    %377 = vmatprep.subr.mxu0 0.0
    %378 = vmatpush1.msra.mxu0 0.0
    %379 = vmatprep.subr.mxu0 0.0
    %380 = vmatpush1.msra.mxu0 0.0
    %381 = vmatprep.subr.mxu0 0.0
    %382 = vmatpush1.msra.mxu0 0.0
    %383 = vmatprep.subr.mxu0 0.0
    %384 = vmatpush1.msra.mxu0 0.0
    %385 = vmatprep.subr.mxu0 0.0
    %386 = vmatpush1.msra.mxu0 0.0
    %387 = vmatprep.subr.mxu0 0.0
    %388 = vmatpush1.msra.mxu0 0.0
    %389 = vmatprep.subr.mxu0 0.0
    %390 = vmatpush1.msra.mxu0 0.0
    %391 = vmatprep.subr.mxu0 0.0
    %392 = vmatpush1.msra.mxu0 0.0
    %393 = vmatprep.mubr.f32.mxu0 0.0
    %394 = vmatmul.mubr.f32.gmra.mrb[0].mxu0 %v114
    %v395 = vpop.f32.mrb[0].mxu0
    %v396 = vadd.f32 0.0, %v395
    %v397 = vpop.f32.mrb[0].mxu0
    %398 = vdwg.mxu0
    %v399 = vadd.f32 %v312, %v396
    %v400 = vld [vmem:[#allocation13] sm:$0x1]
    %v402 = vlaneseq
    %v403 = vshrl.u32 %v402, 7
    %v404 = vsub.s32 0, %v403
    %v405 = vrot.slane %v400, %v404
    %v407 = vadd.f32 %v399, %v405
    %408 = vst [vmem:[#allocation14] sm:$0xff] %v407
    // Predicated region
    $region58: #{tpu_custom_call.1} parent=1 // pred_check
      _
    $region59: #{tpu_custom_call.1} parent=1 // pred_check_branch
      %410 = sbr.rel (0) target = $region61
    $region60: #{tpu_custom_call.1} parent=1 // pred_region
      %s412 = ssub.s32 128, 128
      %413 = vsyncadd [#allocation4], %s412
      %s415 = sshll.u32 [#allocation14], 4
      %s416 = int_to_ptr.vmem [resolvable:$true] %s415
      %418 = dma.vmem_to_hbm [thread:$0]  %s416, 128, %s7, [#allocation4]
    $region61: #{tpu_custom_call.1} parent=1 // pred_fallthru
      _
    // Predicated region
    $region62: #{tpu_custom_call.1} parent=1 // pred_check
      _
    $region63: #{tpu_custom_call.1} parent=1 // pred_check_branch
      %420 = sbr.rel (0) target = $region65
    $region64: #{tpu_custom_call.1} parent=1 // pred_region
      %421 = dma.done [#allocation4], 128
    $region65: #{tpu_custom_call.1} parent=1 // pred_fallthru
      _
    %422 = vsyncpa [#allocation3], 1
    %423 = vsyncpa [#allocation6], 1
    %424 = vsyncpa [#allocation9], 1
    %425 = vsyncpa [#allocation12], 1
    %426 = vsyncpa [#allocation4], 1

// kernel: tpu_custom_call.1
$region0: #{tpu_custom_call.1}
  #allocation0 [shape = 'u32[]', space=smem, size = 0x4, offset = 0x4, fixed_abs, tag = 'smem constant byte address 0x4 - core index']
  #allocation1 [shape = 'u32[144,128]{1,0:T(1,128)}', space=vmem, size = 0x12000, scoped, tag = 'internal scratch']
  %s0 = inlined_call_operand.hbm [shape: f32[8,128], index: 0, kind: input, shape index: {}]
  %s1 = inlined_call_operand.hbm [shape: f32[128,128], index: 1, kind: input, shape index: {}]
  %s2 = inlined_call_operand.hbm [shape: f32[1,128], index: 2, kind: input, shape index: {}]
  %s3 = inlined_call_operand.hbm [shape: f32[128,128], index: 3, kind: input, shape index: {}]
  %s4 = inlined_call_operand.hbm [shape: f32[1,128], index: 4, kind: input, shape index: {}]
  %s5 = inlined_call_operand.hbm [shape: f32[128,128], index: 5, kind: input, shape index: {}]
  %s6 = inlined_call_operand.hbm [shape: f32[1,128], index: 6, kind: input, shape index: {}]
  %s7 = inlined_call_operand.hbm [shape: f32[8,128], index: 7, kind: output, shape index: {}]
  %s8 = sld [smem:[#allocation0]]
  $region66: #{tpu_custom_call.1} parent=0
    _
  %s10 = ssub.s32 1, %s8
  %s11 = scalar_select 0, %s10, %s8
  $region1: #{tpu_custom_call.1} parent=0
    #allocation2 [shape = 'u8[4096]{0}', space=vmem, size = 0x1000, scoped, tag = 'input window, operand 0, single buffered']
    #allocation3 [shape = 's32[1]{0}', space=sflag, size = 0x4, scoped, tag = 'scoped memory for tpu_custom_call.1']
    #allocation4 [shape = 's32[1]{0}', space=sflag, size = 0x4, scoped, tag = 'scoped memory for tpu_custom_call.1']
    #allocation5 [shape = 'u8[65536]{0}', space=vmem, size = 0x10000, scoped, tag = 'input window, operand 1, single buffered']
    #allocation6 [shape = 's32[1]{0}', space=sflag, size = 0x4, scoped, tag = 'scoped memory for tpu_custom_call.1']
    #allocation7 [shape = 'u8[512]{0}', space=vmem, size = 0x400, scoped, tag = 'input window, operand 2, single buffered']
    #allocation8 [shape = 'u8[65536]{0}', space=vmem, size = 0x10000, scoped, tag = 'input window, operand 3, single buffered']
    #allocation9 [shape = 's32[1]{0}', space=sflag, size = 0x4, scoped, tag = 'scoped memory for tpu_custom_call.1']
    #allocation10 [shape = 'u8[512]{0}', space=vmem, size = 0x400, scoped, tag = 'input window, operand 4, single buffered']
    #allocation11 [shape = 'u8[65536]{0}', space=vmem, size = 0x10000, scoped, tag = 'input window, operand 5, single buffered']
    #allocation12 [shape = 's32[1]{0}', space=sflag, size = 0x4, scoped, tag = 'scoped memory for tpu_custom_call.1']
    #allocation13 [shape = 'u8[512]{0}', space=vmem, size = 0x400, scoped, tag = 'input window, operand 6, single buffered']
    #allocation14 [shape = 'u8[4096]{0}', space=vmem, size = 0x1000, scoped, tag = 'output window, operand 0, single buffered']
    %12 = vsyncpa [#allocation3], 0
    %13 = vsyncpa [#allocation6], 0
    %14 = vsyncpa [#allocation9], 0
    %15 = vsyncpa [#allocation12], 0
    %16 = vsyncpa [#allocation4], 0
    // Predicated region
    $region2: #{tpu_custom_call.1} parent=1 // pred_check
      _
    $region3: #{tpu_custom_call.1} parent=1 // pred_check_branch
      %18 = sbr.rel (0) target = $region5
    $region4: #{tpu_custom_call.1} parent=1 // pred_region
      %s20 = ssub.s32 128, 128
      %21 = vsyncadd [#allocation3], %s20
      %s23 = sshll.u32 [#allocation2], 4
      %s24 = int_to_ptr.vmem [resolvable:$true] %s23
      %26 = dma.hbm_to_vmem [thread:$0]  %s0, 128, %s24, [#allocation3]
    $region5: #{tpu_custom_call.1} parent=1 // pred_fallthru
      _
    // Predicated region
    $region6: #{tpu_custom_call.1} parent=1 // pred_check
      _
    $region7: #{tpu_custom_call.1} parent=1 // pred_check_branch
      %28 = sbr.rel (0) target = $region9
    $region8: #{tpu_custom_call.1} parent=1 // pred_region
      %s30 = ssub.s32 2048, 2048
      %31 = vsyncadd [#allocation6], %s30
      %s32 = sshll.u32 [#allocation5], 4
      %s33 = int_to_ptr.vmem [resolvable:$true] %s32
      %38 = dma.hbm_to_vmem [thread:$0]  %s1, 2048, %s33, [#allocation6], 128, 128, 8
    $region9: #{tpu_custom_call.1} parent=1 // pred_fallthru
      _
    // Predicated region
    $region10: #{tpu_custom_call.1} parent=1 // pred_check
      _
    $region11: #{tpu_custom_call.1} parent=1 // pred_check_branch
      %40 = sbr.rel (0) target = $region13
    $region12: #{tpu_custom_call.1} parent=1 // pred_region
      %s42 = ssub.s32 16, 16
      %43 = vsyncadd [#allocation6], %s42
      %s45 = sshll.u32 [#allocation7], 4
      %s46 = int_to_ptr.vmem [resolvable:$true] %s45
      %48 = dma.hbm_to_vmem [thread:$0]  %s2, 16, %s46, [#allocation6]
    $region13: #{tpu_custom_call.1} parent=1 // pred_fallthru
      _
    // Predicated region
    $region14: #{tpu_custom_call.1} parent=1 // pred_check
      _
    $region15: #{tpu_custom_call.1} parent=1 // pred_check_branch
      %50 = sbr.rel (0) target = $region17
    $region16: #{tpu_custom_call.1} parent=1 // pred_region
      %s52 = ssub.s32 2048, 2048
      %53 = vsyncadd [#allocation9], %s52
      %s54 = sshll.u32 [#allocation8], 4
      %s55 = int_to_ptr.vmem [resolvable:$true] %s54
      %60 = dma.hbm_to_vmem [thread:$0]  %s3, 2048, %s55, [#allocation9], 128, 128, 8
    $region17: #{tpu_custom_call.1} parent=1 // pred_fallthru
      _
    // Predicated region
    $region18: #{tpu_custom_call.1} parent=1 // pred_check
      _
    $region19: #{tpu_custom_call.1} parent=1 // pred_check_branch
      %62 = sbr.rel (0) target = $region21
    $region20: #{tpu_custom_call.1} parent=1 // pred_region
      %s64 = ssub.s32 16, 16
      %65 = vsyncadd [#allocation9], %s64
      %s67 = sshll.u32 [#allocation10], 4
      %s68 = int_to_ptr.vmem [resolvable:$true] %s67
      %70 = dma.hbm_to_vmem [thread:$0]  %s4, 16, %s68, [#allocation9]
    $region21: #{tpu_custom_call.1} parent=1 // pred_fallthru
      _
    // Predicated region
    $region22: #{tpu_custom_call.1} parent=1 // pred_check
      _
    $region23: #{tpu_custom_call.1} parent=1 // pred_check_branch
      %72 = sbr.rel (0) target = $region25
    $region24: #{tpu_custom_call.1} parent=1 // pred_region
      %s74 = ssub.s32 2048, 2048
      %75 = vsyncadd [#allocation12], %s74
      %s76 = sshll.u32 [#allocation11], 4
      %s77 = int_to_ptr.vmem [resolvable:$true] %s76
      %82 = dma.hbm_to_vmem [thread:$0]  %s5, 2048, %s77, [#allocation12], 128, 128, 8
    $region25: #{tpu_custom_call.1} parent=1 // pred_fallthru
      _
    // Predicated region
    $region26: #{tpu_custom_call.1} parent=1 // pred_check
      _
    $region27: #{tpu_custom_call.1} parent=1 // pred_check_branch
      %84 = sbr.rel (0) target = $region29
    $region28: #{tpu_custom_call.1} parent=1 // pred_region
      %s86 = ssub.s32 16, 16
      %87 = vsyncadd [#allocation12], %s86
      %s89 = sshll.u32 [#allocation13], 4
      %s90 = int_to_ptr.vmem [resolvable:$true] %s89
      %92 = dma.hbm_to_vmem [thread:$0]  %s6, 16, %s90, [#allocation12]
    $region29: #{tpu_custom_call.1} parent=1 // pred_fallthru
      _
    // Predicated region
    $region30: #{tpu_custom_call.1} parent=1 // pred_check
      _
    $region31: #{tpu_custom_call.1} parent=1 // pred_check_branch
      %94 = sbr.rel (0) target = $region33
    $region32: #{tpu_custom_call.1} parent=1 // pred_region
      %95 = dma.done [#allocation3], 128
    $region33: #{tpu_custom_call.1} parent=1 // pred_fallthru
      _
    // Predicated region
    $region34: #{tpu_custom_call.1} parent=1 // pred_check
      _
    $region35: #{tpu_custom_call.1} parent=1 // pred_check_branch
      %97 = sbr.rel (0) target = $region37
    $region36: #{tpu_custom_call.1} parent=1 // pred_region
      %98 = dma.done [#allocation6], 2048
    $region37: #{tpu_custom_call.1} parent=1 // pred_fallthru
      _
    // Predicated region
    $region38: #{tpu_custom_call.1} parent=1 // pred_check
      _
    $region39: #{tpu_custom_call.1} parent=1 // pred_check_branch
      %100 = sbr.rel (0) target = $region41
    $region40: #{tpu_custom_call.1} parent=1 // pred_region
      %101 = dma.done [#allocation6], 16
    $region41: #{tpu_custom_call.1} parent=1 // pred_fallthru
      _
    // Predicated region
    $region42: #{tpu_custom_call.1} parent=1 // pred_check
      _
    $region43: #{tpu_custom_call.1} parent=1 // pred_check_branch
      %103 = sbr.rel (0) target = $region45
    $region44: #{tpu_custom_call.1} parent=1 // pred_region
      %104 = dma.done [#allocation9], 2048
    $region45: #{tpu_custom_call.1} parent=1 // pred_fallthru
      _
    // Predicated region
    $region46: #{tpu_custom_call.1} parent=1 // pred_check
      _
    $region47: #{tpu_custom_call.1} parent=1 // pred_check_branch
      %106 = sbr.rel (0) target = $region49
    $region48: #{tpu_custom_call.1} parent=1 // pred_region
      %107 = dma.done [#allocation9], 16
    $region49: #{tpu_custom_call.1} parent=1 // pred_fallthru
      _
    // Predicated region
    $region50: #{tpu_custom_call.1} parent=1 // pred_check
      _
    $region51: #{tpu_custom_call.1} parent=1 // pred_check_branch
      %109 = sbr.rel (0) target = $region53
    $region52: #{tpu_custom_call.1} parent=1 // pred_region
      %110 = dma.done [#allocation12], 2048
    $region53: #{tpu_custom_call.1} parent=1 // pred_fallthru
      _
    // Predicated region
    $region54: #{tpu_custom_call.1} parent=1 // pred_check
      _
    $region55: #{tpu_custom_call.1} parent=1 // pred_check_branch
      %112 = sbr.rel (0) target = $region57
    $region56: #{tpu_custom_call.1} parent=1 // pred_region
      %113 = dma.done [#allocation12], 16
    $region57: #{tpu_custom_call.1} parent=1 // pred_fallthru
      _
    %v114 = vld [vmem:[#allocation2] sm:$0xff]
    %v115 = vld [vmem:[#allocation5] sm:$0xff]
    %v116 = vld [vmem:[#allocation5 + $0x8] sm:$0xff]
    %v117 = vld [vmem:[#allocation5 + $0x10] sm:$0xff]
    %v118 = vld [vmem:[#allocation5 + $0x18] sm:$0xff]
    %v119 = vld [vmem:[#allocation5 + $0x20] sm:$0xff]
    %v120 = vld [vmem:[#allocation5 + $0x28] sm:$0xff]
    %v121 = vld [vmem:[#allocation5 + $0x30] sm:$0xff]
    %v122 = vld [vmem:[#allocation5 + $0x38] sm:$0xff]
    %v123 = vld [vmem:[#allocation5 + $0x40] sm:$0xff]
    %v124 = vld [vmem:[#allocation5 + $0x48] sm:$0xff]
    %v125 = vld [vmem:[#allocation5 + $0x50] sm:$0xff]
    %v126 = vld [vmem:[#allocation5 + $0x58] sm:$0xff]
    %v127 = vld [vmem:[#allocation5 + $0x60] sm:$0xff]
    %v128 = vld [vmem:[#allocation5 + $0x68] sm:$0xff]
    %v129 = vld [vmem:[#allocation5 + $0x70] sm:$0xff]
    %v130 = vld [vmem:[#allocation5 + $0x78] sm:$0xff]
    %v131 = vld [vmem:[#allocation7] sm:$0x1]
    %v133 = vlaneseq
    %v134 = vshrl.u32 %v133, 7
    %v135 = vsub.s32 0, %v134
    %v136 = vrot.slane %v131, %v135
    %138 = vmatprep.subr.mxu0 0.0
    %139 = vmatpush1.msra.mxu0 %v115
    %140 = vmatprep.subr.mxu0 0.0
    %141 = vmatpush1.msra.mxu0 %v116
    %142 = vmatprep.subr.mxu0 0.0
    %143 = vmatpush1.msra.mxu0 %v117
    %144 = vmatprep.subr.mxu0 0.0
    %145 = vmatpush1.msra.mxu0 %v118
    %146 = vmatprep.subr.mxu0 0.0
    %147 = vmatpush1.msra.mxu0 %v119
    %148 = vmatprep.subr.mxu0 0.0
    %149 = vmatpush1.msra.mxu0 %v120
    %150 = vmatprep.subr.mxu0 0.0
    %151 = vmatpush1.msra.mxu0 %v121
    %152 = vmatprep.subr.mxu0 0.0
    %153 = vmatpush1.msra.mxu0 %v122
    %154 = vmatprep.subr.mxu0 0.0
    %155 = vmatpush1.msra.mxu0 %v123
    %156 = vmatprep.subr.mxu0 0.0
    %157 = vmatpush1.msra.mxu0 %v124
    %158 = vmatprep.subr.mxu0 0.0
    %159 = vmatpush1.msra.mxu0 %v125
    %160 = vmatprep.subr.mxu0 0.0
    %161 = vmatpush1.msra.mxu0 %v126
    %162 = vmatprep.subr.mxu0 0.0
    %163 = vmatpush1.msra.mxu0 %v127
    %164 = vmatprep.subr.mxu0 0.0
    %165 = vmatpush1.msra.mxu0 %v128
    %166 = vmatprep.subr.mxu0 0.0
    %167 = vmatpush1.msra.mxu0 %v129
    %168 = vmatprep.subr.mxu0 0.0
    %169 = vmatpush1.msra.mxu0 %v130
    %170 = vmatprep.subr.mxu0 0.0
    %171 = vmatpush1.msra.mxu0 0.0
    %172 = vmatprep.subr.mxu0 0.0
    %173 = vmatpush1.msra.mxu0 0.0
    %174 = vmatprep.subr.mxu0 0.0
    %175 = vmatpush1.msra.mxu0 0.0
    %176 = vmatprep.subr.mxu0 0.0
    %177 = vmatpush1.msra.mxu0 0.0
    %178 = vmatprep.subr.mxu0 0.0
    %179 = vmatpush1.msra.mxu0 0.0
    %180 = vmatprep.subr.mxu0 0.0
    %181 = vmatpush1.msra.mxu0 0.0
    %182 = vmatprep.subr.mxu0 0.0
    %183 = vmatpush1.msra.mxu0 0.0
    %184 = vmatprep.subr.mxu0 0.0
    %185 = vmatpush1.msra.mxu0 0.0
    %186 = vmatprep.subr.mxu0 0.0
    %187 = vmatpush1.msra.mxu0 0.0
    %188 = vmatprep.subr.mxu0 0.0
    %189 = vmatpush1.msra.mxu0 0.0
    %190 = vmatprep.subr.mxu0 0.0
    %191 = vmatpush1.msra.mxu0 0.0
    %192 = vmatprep.subr.mxu0 0.0
    %193 = vmatpush1.msra.mxu0 0.0
    %194 = vmatprep.subr.mxu0 0.0
    %195 = vmatpush1.msra.mxu0 0.0
    %196 = vmatprep.subr.mxu0 0.0
    %197 = vmatpush1.msra.mxu0 0.0
    %198 = vmatprep.subr.mxu0 0.0
    %199 = vmatpush1.msra.mxu0 0.0
    %200 = vmatprep.subr.mxu0 0.0
    %201 = vmatpush1.msra.mxu0 0.0
    %202 = vmatprep.mubr.f32.mxu0 0.0
    %203 = vmatmul.mubr.f32.gmra.mrb[0].mxu0 %v114
    %v204 = vpop.f32.mrb[0].mxu0
    %v205 = vadd.f32 %v136, %v204
    %v206 = vpop.f32.mrb[0].mxu0
    %207 = vdwg.mxu0
    %v208 = vsub.f32 0.0, %v205
    %v209 = vmul.f32 %v208, 1.442695
    %v210 = vpow.pop %v209
    %v211 = vadd.f32 %v210, 1.0
    %v212 = vrcp.pop %v211
    %v213 = vmul.f32 %v205, %v212
    %v214 = vld [vmem:[#allocation8] sm:$0xff]
    %v215 = vld [vmem:[#allocation8 + $0x8] sm:$0xff]
    %v216 = vld [vmem:[#allocation8 + $0x10] sm:$0xff]
    %v217 = vld [vmem:[#allocation8 + $0x18] sm:$0xff]
    %v218 = vld [vmem:[#allocation8 + $0x20] sm:$0xff]
    %v219 = vld [vmem:[#allocation8 + $0x28] sm:$0xff]
    %v220 = vld [vmem:[#allocation8 + $0x30] sm:$0xff]
    %v221 = vld [vmem:[#allocation8 + $0x38] sm:$0xff]
    %v222 = vld [vmem:[#allocation8 + $0x40] sm:$0xff]
    %v223 = vld [vmem:[#allocation8 + $0x48] sm:$0xff]
    %v224 = vld [vmem:[#allocation8 + $0x50] sm:$0xff]
    %v225 = vld [vmem:[#allocation8 + $0x58] sm:$0xff]
    %v226 = vld [vmem:[#allocation8 + $0x60] sm:$0xff]
    %v227 = vld [vmem:[#allocation8 + $0x68] sm:$0xff]
    %v228 = vld [vmem:[#allocation8 + $0x70] sm:$0xff]
    %v229 = vld [vmem:[#allocation8 + $0x78] sm:$0xff]
    %v230 = vld [vmem:[#allocation10] sm:$0x1]
    %v232 = vlaneseq
    %v233 = vshrl.u32 %v232, 7
    %v234 = vsub.s32 0, %v233
    %v235 = vrot.slane %v230, %v234
    %237 = vmatprep.subr.mxu0 0.0
    %238 = vmatpush1.msra.mxu0 %v214
    %239 = vmatprep.subr.mxu0 0.0
    %240 = vmatpush1.msra.mxu0 %v215
    %241 = vmatprep.subr.mxu0 0.0
    %242 = vmatpush1.msra.mxu0 %v216
    %243 = vmatprep.subr.mxu0 0.0
    %244 = vmatpush1.msra.mxu0 %v217
    %245 = vmatprep.subr.mxu0 0.0
    %246 = vmatpush1.msra.mxu0 %v218
    %247 = vmatprep.subr.mxu0 0.0
    %248 = vmatpush1.msra.mxu0 %v219
    %249 = vmatprep.subr.mxu0 0.0
    %250 = vmatpush1.msra.mxu0 %v220
    %251 = vmatprep.subr.mxu0 0.0
    %252 = vmatpush1.msra.mxu0 %v221
    %253 = vmatprep.subr.mxu0 0.0
    %254 = vmatpush1.msra.mxu0 %v222
    %255 = vmatprep.subr.mxu0 0.0
    %256 = vmatpush1.msra.mxu0 %v223
    %257 = vmatprep.subr.mxu0 0.0
    %258 = vmatpush1.msra.mxu0 %v224
    %259 = vmatprep.subr.mxu0 0.0
    %260 = vmatpush1.msra.mxu0 %v225
    %261 = vmatprep.subr.mxu0 0.0
    %262 = vmatpush1.msra.mxu0 %v226
    %263 = vmatprep.subr.mxu0 0.0
    %264 = vmatpush1.msra.mxu0 %v227
    %265 = vmatprep.subr.mxu0 0.0
    %266 = vmatpush1.msra.mxu0 %v228
    %267 = vmatprep.subr.mxu0 0.0
    %268 = vmatpush1.msra.mxu0 %v229
    %269 = vmatprep.subr.mxu0 0.0
    %270 = vmatpush1.msra.mxu0 0.0
    %271 = vmatprep.subr.mxu0 0.0
    %272 = vmatpush1.msra.mxu0 0.0
    %273 = vmatprep.subr.mxu0 0.0
    %274 = vmatpush1.msra.mxu0 0.0
    %275 = vmatprep.subr.mxu0 0.0
    %276 = vmatpush1.msra.mxu0 0.0
    %277 = vmatprep.subr.mxu0 0.0
    %278 = vmatpush1.msra.mxu0 0.0
    %279 = vmatprep.subr.mxu0 0.0
    %280 = vmatpush1.msra.mxu0 0.0
    %281 = vmatprep.subr.mxu0 0.0
    %282 = vmatpush1.msra.mxu0 0.0
    %283 = vmatprep.subr.mxu0 0.0
    %284 = vmatpush1.msra.mxu0 0.0
    %285 = vmatprep.subr.mxu0 0.0
    %286 = vmatpush1.msra.mxu0 0.0
    %287 = vmatprep.subr.mxu0 0.0
    %288 = vmatpush1.msra.mxu0 0.0
    %289 = vmatprep.subr.mxu0 0.0
    %290 = vmatpush1.msra.mxu0 0.0
    %291 = vmatprep.subr.mxu0 0.0
    %292 = vmatpush1.msra.mxu0 0.0
    %293 = vmatprep.subr.mxu0 0.0
    %294 = vmatpush1.msra.mxu0 0.0
    %295 = vmatprep.subr.mxu0 0.0
    %296 = vmatpush1.msra.mxu0 0.0
    %297 = vmatprep.subr.mxu0 0.0
    %298 = vmatpush1.msra.mxu0 0.0
    %299 = vmatprep.subr.mxu0 0.0
    %300 = vmatpush1.msra.mxu0 0.0
    %301 = vmatprep.mubr.f32.mxu0 0.0
    %302 = vmatmul.mubr.f32.gmra.mrb[0].mxu0 %v213
    %v303 = vpop.f32.mrb[0].mxu0
    %v304 = vadd.f32 %v235, %v303
    %v305 = vpop.f32.mrb[0].mxu0
    %306 = vdwg.mxu0
    %v307 = vsub.f32 0.0, %v304
    %v308 = vmul.f32 %v307, 1.442695
    %v309 = vpow.pop %v308
    %v310 = vadd.f32 %v309, 1.0
    %v311 = vrcp.pop %v310
    %v312 = vmul.f32 %v304, %v311
    %v313 = vld [vmem:[#allocation11] sm:$0xff]
    %v314 = vld [vmem:[#allocation11 + $0x8] sm:$0xff]
    %v315 = vld [vmem:[#allocation11 + $0x10] sm:$0xff]
    %v316 = vld [vmem:[#allocation11 + $0x18] sm:$0xff]
    %v317 = vld [vmem:[#allocation11 + $0x20] sm:$0xff]
    %v318 = vld [vmem:[#allocation11 + $0x28] sm:$0xff]
    %v319 = vld [vmem:[#allocation11 + $0x30] sm:$0xff]
    %v320 = vld [vmem:[#allocation11 + $0x38] sm:$0xff]
    %v321 = vld [vmem:[#allocation11 + $0x40] sm:$0xff]
    %v322 = vld [vmem:[#allocation11 + $0x48] sm:$0xff]
    %v323 = vld [vmem:[#allocation11 + $0x50] sm:$0xff]
    %v324 = vld [vmem:[#allocation11 + $0x58] sm:$0xff]
    %v325 = vld [vmem:[#allocation11 + $0x60] sm:$0xff]
    %v326 = vld [vmem:[#allocation11 + $0x68] sm:$0xff]
    %v327 = vld [vmem:[#allocation11 + $0x70] sm:$0xff]
    %v328 = vld [vmem:[#allocation11 + $0x78] sm:$0xff]
    %329 = vmatprep.subr.mxu0 0.0
    %330 = vmatpush1.msra.mxu0 %v313
    %331 = vmatprep.subr.mxu0 0.0
    %332 = vmatpush1.msra.mxu0 %v314
    %333 = vmatprep.subr.mxu0 0.0
    %334 = vmatpush1.msra.mxu0 %v315
    %335 = vmatprep.subr.mxu0 0.0
    %336 = vmatpush1.msra.mxu0 %v316
    %337 = vmatprep.subr.mxu0 0.0
    %338 = vmatpush1.msra.mxu0 %v317
    %339 = vmatprep.subr.mxu0 0.0
    %340 = vmatpush1.msra.mxu0 %v318
    %341 = vmatprep.subr.mxu0 0.0
    %342 = vmatpush1.msra.mxu0 %v319
    %343 = vmatprep.subr.mxu0 0.0
    %344 = vmatpush1.msra.mxu0 %v320
    %345 = vmatprep.subr.mxu0 0.0
    %346 = vmatpush1.msra.mxu0 %v321
    %347 = vmatprep.subr.mxu0 0.0
    %348 = vmatpush1.msra.mxu0 %v322
    %349 = vmatprep.subr.mxu0 0.0
    %350 = vmatpush1.msra.mxu0 %v323
    %351 = vmatprep.subr.mxu0 0.0
    %352 = vmatpush1.msra.mxu0 %v324
    %353 = vmatprep.subr.mxu0 0.0
    %354 = vmatpush1.msra.mxu0 %v325
    %355 = vmatprep.subr.mxu0 0.0
    %356 = vmatpush1.msra.mxu0 %v326
    %357 = vmatprep.subr.mxu0 0.0
    %358 = vmatpush1.msra.mxu0 %v327
    %359 = vmatprep.subr.mxu0 0.0
    %360 = vmatpush1.msra.mxu0 %v328
    %361 = vmatprep.subr.mxu0 0.0
    %362 = vmatpush1.msra.mxu0 0.0
    %363 = vmatprep.subr.mxu0 0.0
    %364 = vmatpush1.msra.mxu0 0.0
    %365 = vmatprep.subr.mxu0 0.0
    %366 = vmatpush1.msra.mxu0 0.0
    %367 = vmatprep.subr.mxu0 0.0
    %368 = vmatpush1.msra.mxu0 0.0
    %369 = vmatprep.subr.mxu0 0.0
    %370 = vmatpush1.msra.mxu0 0.0
    %371 = vmatprep.subr.mxu0 0.0
    %372 = vmatpush1.msra.mxu0 0.0
    %373 = vmatprep.subr.mxu0 0.0
    %374 = vmatpush1.msra.mxu0 0.0
    %375 = vmatprep.subr.mxu0 0.0
    %376 = vmatpush1.msra.mxu0 0.0
    %377 = vmatprep.subr.mxu0 0.0
    %378 = vmatpush1.msra.mxu0 0.0
    %379 = vmatprep.subr.mxu0 0.0
    %380 = vmatpush1.msra.mxu0 0.0
    %381 = vmatprep.subr.mxu0 0.0
    %382 = vmatpush1.msra.mxu0 0.0
    %383 = vmatprep.subr.mxu0 0.0
    %384 = vmatpush1.msra.mxu0 0.0
    %385 = vmatprep.subr.mxu0 0.0
    %386 = vmatpush1.msra.mxu0 0.0
    %387 = vmatprep.subr.mxu0 0.0
    %388 = vmatpush1.msra.mxu0 0.0
    %389 = vmatprep.subr.mxu0 0.0
    %390 = vmatpush1.msra.mxu0 0.0
    %391 = vmatprep.subr.mxu0 0.0
    %392 = vmatpush1.msra.mxu0 0.0
    %393 = vmatprep.mubr.f32.mxu0 0.0
    %394 = vmatmul.mubr.f32.gmra.mrb[0].mxu0 %v114
    %v395 = vpop.f32.mrb[0].mxu0
    %v396 = vadd.f32 0.0, %v395
    %v397 = vpop.f32.mrb[0].mxu0
    %398 = vdwg.mxu0
    %v399 = vadd.f32 %v312, %v396
    %v400 = vld [vmem:[#allocation13] sm:$0x1]
    %v402 = vlaneseq
    %v403 = vshrl.u32 %v402, 7
    %v404 = vsub.s32 0, %v403
    %v405 = vrot.slane %v400, %v404
    %v407 = vadd.f32 %v399, %v405
    %408 = vst [vmem:[#allocation14] sm:$0xff] %v407
    // Predicated region
    $region58: #{tpu_custom_call.1} parent=1 // pred_check
      _
    $region59: #{tpu_custom_call.1} parent=1 // pred_check_branch
      %410 = sbr.rel (0) target = $region61
    $region60: #{tpu_custom_call.1} parent=1 // pred_region
      %s412 = ssub.s32 128, 128
      %413 = vsyncadd [#allocation4], %s412
      %s415 = sshll.u32 [#allocation14], 4
      %s416 = int_to_ptr.vmem [resolvable:$true] %s415
      %418 = dma.vmem_to_hbm [thread:$0]  %s416, 128, %s7, [#allocation4]
    $region61: #{tpu_custom_call.1} parent=1 // pred_fallthru
      _
    // Predicated region
    $region62: #{tpu_custom_call.1} parent=1 // pred_check
      _
    $region63: #{tpu_custom_call.1} parent=1 // pred_check_branch
      %420 = sbr.rel (0) target = $region65
    $region64: #{tpu_custom_call.1} parent=1 // pred_region
      %421 = dma.done [#allocation4], 128
    $region65: #{tpu_custom_call.1} parent=1 // pred_fallthru
      _
    %422 = vsyncpa [#allocation3], 1
    %423 = vsyncpa [#allocation6], 1
    %424 = vsyncpa [#allocation9], 1
    %425 = vsyncpa [#allocation12], 1
    %426 = vsyncpa [#allocation4], 1

</llo_original>
